<compile_context>
chip_gen: v7x
topology: tpu7x:2x2x1
jax: 0.10.0
libtpu: 0.0.40
codegen_flags: <defaults>
</compile_context>

<pallas_src>
import functools

import jax
import jax.numpy as jnp
from jax.experimental import pallas as pl
from jax.experimental.pallas import tpu as pltpu


def _layernorm_kernel(x_ref, g_ref, b_ref, o_ref, *, eps, inv_c):
    # x_ref: (Bn, C, T_HW); g_ref/b_ref: (1, C, T_HW) f32 (resident); o_ref like x_ref.
    # --- stats: pivot-shifted one-pass sums over the channel (sublane) axis ---
    # d = x - x[ch0] keeps s2/C - (s1/C)^2 free of catastrophic cancellation
    # ((s1/C)^2 <= (C-1)*var), unlike the raw E[x^2] - mean^2 form.
    x = x_ref[...].astype(jnp.float32)                       # (Bn, C, T)
    x0 = x[:, 0:1, :]                                        # (Bn, 1, T) pivot
    d = x - x0
    s1 = jnp.sum(d, axis=1, keepdims=True)                   # (Bn, 1, T)
    s2 = jnp.sum(d * d, axis=1, keepdims=True)               # (Bn, 1, T)
    dm = s1 * inv_c                                          # mean - x0
    mean = x0 + dm
    var = jnp.maximum(s2 * inv_c - dm * dm, 0.0)             # unbiased=False
    # One (Bn, 1, T) reciprocal instead of a full-block divide.  approx=True
    # would move it fully onto the EUP but its ~1e-4 relative error breaks the
    # f32 1e-5 tolerance; the kernel is HBM-bound so the exact form is free.
    inv = pl.reciprocal(jnp.sqrt(var) + eps, approx=False)
    # --- output sweep: re-read the VMEM-resident input block instead of -------
    # keeping a centered full-block temp live across the reduction.
    y = (x_ref[...].astype(jnp.float32) - mean) * inv * g_ref[...] + b_ref[...]
    o_ref[...] = y.astype(o_ref.dtype)


def _pick_batch_block(n, c):
    """Pack several batch rows per step when C is small.  Note: this only
    amortizes the ~0.35 us per-step overhead; it does not reclaim sublane
    padding when C < 8 (f32)."""
    if c >= 8:
        return 1
    for cand in (8, 4, 2):
        if n % cand == 0:
            return cand
    return 1


def _pick_hw_tile(hw, bn, c, bytes_per_elem, target_bytes=1536 * 1024):
    """Largest multiple-of-128 lane tile keeping the native-dtype block under
    ~target_bytes.  No divisibility requirement: the grid uses cdiv and Pallas
    masks the single partial edge tile."""
    hw_ceil = ((hw + 127) // 128) * 128
    cap_elems = max(128, target_bytes // max(1, bn * c * bytes_per_elem))
    cap = max(128, (cap_elems // 128) * 128)
    return min(hw_ceil, cap)


def _adjust_for_parallelism(n, bn, hw, t_hw, min_steps=8):
    """Keep enough (parallel, parallel) grid steps to feed both v7x
    TensorCores: shrink the lane tile first, then the batch packing."""
    def steps(b, t):
        return (n // b) * pl.cdiv(hw, t)
    while steps(bn, t_hw) < min_steps and t_hw > 128:
        t_hw = max(128, ((t_hw // 2) // 128) * 128)
    if steps(bn, t_hw) < min_steps and bn > 1:
        bn = 1
    return bn, t_hw


def layernorm_nchw(x, g, b, eps=1e-5):
    """x: (N, C, H, W); g, b: (1, C, 1, 1).  Returns (N, C, H, W)."""
    N, C, H, W = x.shape
    HW = H * W
    itemsize = jnp.dtype(x.dtype).itemsize

    Bn = _pick_batch_block(N, C)
    T_HW = _pick_hw_tile(HW, Bn, C, itemsize)
    Bn, T_HW = _adjust_for_parallelism(N, Bn, HW, T_HW)

    # No HBM pad/unpad round trip: keep the logical (N, C, HW) shape and let
    # Pallas mask the single partial edge tile along HW.
    x3 = x.reshape(N, C, HW)
    # Params: upcast once and pre-broadcast to lane-dense blocks; the constant
    # index_map keeps them resident in VMEM across all grid steps.
    g3 = jnp.broadcast_to(g.reshape(1, C, 1).astype(jnp.float32), (1, C, T_HW))
    b3 = jnp.broadcast_to(b.reshape(1, C, 1).astype(jnp.float32), (1, C, T_HW))

    grid = (N // Bn, pl.cdiv(HW, T_HW))

    # Explicit VMEM budget (v7x: 64 MiB physical / 32 MiB scoped default;
    # v5e: 16 MiB scoped default): double-buffered in+out blocks, f32 working
    # copies, resident params, plus slack for Mosaic internal scratch.
    blk = Bn * C * T_HW
    vmem_bytes = (4 * blk * itemsize        # 2x in + 2x out native blocks
                  + 4 * blk * 4             # f32 working set / temps
                  + 2 * C * T_HW * 4        # resident g / b
                  + (4 << 20))              # slack
    vmem_limit = int(min(max(vmem_bytes, 16 << 20), 48 << 20))

    kernel = functools.partial(_layernorm_kernel, eps=eps, inv_c=1.0 / C)

    out3 = pl.pallas_call(
        kernel,
        out_shape=jax.ShapeDtypeStruct((N, C, HW), x.dtype),
        grid_spec=pltpu.PrefetchScalarGridSpec(
            num_scalar_prefetch=0,
            grid=grid,
            in_specs=[
                pl.BlockSpec((Bn, C, T_HW), lambda n, h: (n, 0, h)),
                pl.BlockSpec((1, C, T_HW), lambda n, h: (0, 0, 0)),
                pl.BlockSpec((1, C, T_HW), lambda n, h: (0, 0, 0)),
            ],
            out_specs=pl.BlockSpec((Bn, C, T_HW), lambda n, h: (n, 0, h)),
        ),
        compiler_params=pltpu.CompilerParams(
            dimension_semantics=("parallel", "parallel"),
            vmem_limit_bytes=vmem_limit),
    )(x3, g3, b3)

    return out3.reshape(N, C, H, W)


def layernorm_ref(x, g, b, eps=1e-5):
    mean = jnp.mean(x, axis=1, keepdims=True)
    var = jnp.mean((x - mean) ** 2, axis=1, keepdims=True)
    std = jnp.sqrt(var)
    return (x - mean) / (std + eps) * g + b


if __name__ == "__main__":
    key = jax.random.PRNGKey(0)
    N, C, H, W = 2, 4, 16, 16
    x = jax.random.normal(key, (N, C, H, W), dtype=jnp.float32)

    # Deterministic parameter init matching nn.Parameter(torch.ones/zeros(1, dim, 1, 1))
    g = jnp.ones((1, C, 1, 1), dtype=jnp.float32)
    b = jnp.zeros((1, C, 1, 1), dtype=jnp.float32)

    out = layernorm_nchw(x, g, b, eps=1e-5)
    jax.block_until_ready(out)

    ref = layernorm_ref(x, g, b, eps=1e-5)
    assert out.shape == (N, C, H, W)
    assert jnp.allclose(out, ref, atol=1e-5, rtol=1e-5)

    print("KERNEL_OK")
</pallas_src>

<mosaic_0001>
module attributes {stable_mosaic.version = 11 : i64} {
  func.func @_layernorm_kernel(%arg0: i32, %arg1: i32, %arg2: memref<1x4x128xf32, #tpu.memory_space<vmem>>, %arg3: memref<1x4x128xf32, #tpu.memory_space<vmem>>, %arg4: memref<1x4x128xf32, #tpu.memory_space<vmem>>, %arg5: memref<1x4x128xf32, #tpu.memory_space<vmem>>) attributes {dimension_semantics = [#tpu.dimension_semantics<parallel>, #tpu.dimension_semantics<parallel>], iteration_bounds = array<i64: 2, 2>, scalar_prefetch = 0 : i64, scratch_operands = 0 : i64, tpu.core_type = #tpu.core_type<tc>, window_params = [{transform_indices = @transform_0, window_bounds = array<i64: 1, 4, 128>}, {pipeline_mode = #tpu.pipeline_mode<synchronous>, transform_indices = @transform_1, window_bounds = array<i64: 1, 4, 128>}, {pipeline_mode = #tpu.pipeline_mode<synchronous>, transform_indices = @transform_2, window_bounds = array<i64: 1, 4, 128>}, {transform_indices = @transform_3, window_bounds = array<i64: 1, 4, 128>}]} {
    %c0 = arith.constant 0 : index
    %c0_0 = arith.constant 0 : index
    %c0_1 = arith.constant 0 : index
    %0 = vector.load %arg2[%c0, %c0_0, %c0_1] : memref<1x4x128xf32, #tpu.memory_space<vmem>>, vector<1x4x128xf32>
    %1 = vector.extract_strided_slice %0 {offsets = [0, 0, 0], sizes = [1, 1, 128], strides = [1, 1, 1]} : vector<1x4x128xf32> to vector<1x1x128xf32>
    %2 = vector.broadcast %1 : vector<1x1x128xf32> to vector<1x4x128xf32>
    %3 = arith.subf %0, %2 : vector<1x4x128xf32>
    %cst = arith.constant dense<0.000000e+00> : vector<1x128xf32>
    %4 = vector.multi_reduction <add>, %3, %cst [1] : vector<1x4x128xf32> to vector<1x128xf32>
    %5 = vector.shape_cast %4 : vector<1x128xf32> to vector<1x1x128xf32>
    %6 = arith.mulf %3, %3 : vector<1x4x128xf32>
    %cst_2 = arith.constant dense<0.000000e+00> : vector<1x128xf32>
    %7 = vector.multi_reduction <add>, %6, %cst_2 [1] : vector<1x4x128xf32> to vector<1x128xf32>
    %8 = vector.shape_cast %7 : vector<1x128xf32> to vector<1x1x128xf32>
    %cst_3 = arith.constant 2.500000e-01 : f32
    %9 = vector.broadcast %cst_3 : f32 to vector<1x1x128xf32>
    %10 = arith.mulf %5, %9 : vector<1x1x128xf32>
    %11 = arith.addf %1, %10 : vector<1x1x128xf32>
    %cst_4 = arith.constant 2.500000e-01 : f32
    %12 = vector.broadcast %cst_4 : f32 to vector<1x1x128xf32>
    %13 = arith.mulf %8, %12 : vector<1x1x128xf32>
    %14 = arith.mulf %10, %10 : vector<1x1x128xf32>
    %15 = arith.subf %13, %14 : vector<1x1x128xf32>
    %cst_5 = arith.constant 0.000000e+00 : f32
    %16 = vector.broadcast %cst_5 : f32 to vector<1x1x128xf32>
    %17 = arith.maximumf %15, %16 : vector<1x1x128xf32>
    %18 = math.sqrt %17 : vector<1x1x128xf32>
    %cst_6 = arith.constant 9.99999974E-6 : f32
    %19 = vector.broadcast %cst_6 : f32 to vector<1x1x128xf32>
    %20 = arith.addf %18, %19 : vector<1x1x128xf32>
    %21 = tpu.reciprocal %20 : vector<1x1x128xf32> -> vector<1x1x128xf32>
    %c0_7 = arith.constant 0 : index
    %c0_8 = arith.constant 0 : index
    %c0_9 = arith.constant 0 : index
    %22 = vector.load %arg2[%c0_7, %c0_8, %c0_9] : memref<1x4x128xf32, #tpu.memory_space<vmem>>, vector<1x4x128xf32>
    %23 = vector.broadcast %11 : vector<1x1x128xf32> to vector<1x4x128xf32>
    %24 = arith.subf %22, %23 : vector<1x4x128xf32>
    %25 = vector.broadcast %21 : vector<1x1x128xf32> to vector<1x4x128xf32>
    %26 = arith.mulf %24, %25 : vector<1x4x128xf32>
    %c0_10 = arith.constant 0 : index
    %c0_11 = arith.constant 0 : index
    %c0_12 = arith.constant 0 : index
    %27 = vector.load %arg3[%c0_10, %c0_11, %c0_12] : memref<1x4x128xf32, #tpu.memory_space<vmem>>, vector<1x4x128xf32>
    %28 = arith.mulf %26, %27 : vector<1x4x128xf32>
    %c0_13 = arith.constant 0 : index
    %c0_14 = arith.constant 0 : index
    %c0_15 = arith.constant 0 : index
    %29 = vector.load %arg4[%c0_13, %c0_14, %c0_15] : memref<1x4x128xf32, #tpu.memory_space<vmem>>, vector<1x4x128xf32>
    %30 = arith.addf %28, %29 : vector<1x4x128xf32>
    %c0_16 = arith.constant 0 : index
    %c0_17 = arith.constant 0 : index
    %c0_18 = arith.constant 0 : index
    %31 = vector.load %arg5[%c0_16, %c0_17, %c0_18] : memref<1x4x128xf32, #tpu.memory_space<vmem>>, vector<1x4x128xf32>
    tpu.vector_store %arg5[%c0_16, %c0_17, %c0_18], %30 {strides = array<i32>} : memref<1x4x128xf32, #tpu.memory_space<vmem>>, vector<1x4x128xf32>,
    return
  }
  func.func @transform_0(%arg0: i32, %arg1: i32) -> (i32, i32, i32) {
    %c0_i32 = arith.constant 0 : i32
    %c0_i32_0 = arith.constant 0 : i32
    return %arg0, %c0_i32, %arg1 : i32, i32, i32
  }
  func.func @transform_1(%arg0: i32, %arg1: i32) -> (i32, i32, i32) {
    %c0_i32 = arith.constant 0 : i32
    %c0_i32_0 = arith.constant 0 : i32
    %c0_i32_1 = arith.constant 0 : i32
    %c0_i32_2 = arith.constant 0 : i32
    return %c0_i32, %c0_i32_0, %c0_i32_1 : i32, i32, i32
  }
  func.func @transform_2(%arg0: i32, %arg1: i32) -> (i32, i32, i32) {
    %c0_i32 = arith.constant 0 : i32
    %c0_i32_0 = arith.constant 0 : i32
    %c0_i32_1 = arith.constant 0 : i32
    %c0_i32_2 = arith.constant 0 : i32
    return %c0_i32, %c0_i32_0, %c0_i32_1 : i32, i32, i32
  }
  func.func @transform_3(%arg0: i32, %arg1: i32) -> (i32, i32, i32) {
    %c0_i32 = arith.constant 0 : i32
    %c0_i32_0 = arith.constant 0 : i32
    return %arg0, %c0_i32, %arg1 : i32, i32, i32
  }
}

</mosaic_0001>

<llo_original>
// kernel: tpu_custom_call.1
$region0: #{tpu_custom_call.1}
  #allocation0 [shape = 'u32[]', space=smem, size = 0x4, offset = 0x4, fixed_abs, tag = 'smem constant byte address 0x4 - core index']
  #allocation1 [shape = 'u32[144,128]{1,0:T(1,128)}', space=vmem, size = 0x12000, scoped, tag = 'internal scratch']
  %s0 = inlined_call_operand.hbm [shape: f32[2,4,256], index: 0, kind: input, shape index: {}]
  %s1 = inlined_call_operand.hbm [shape: f32[1,4,128], index: 1, kind: input, shape index: {}]
  %s2 = inlined_call_operand.vmem [shape: f32[1,4,128], index: 2, kind: input, shape index: {}]
  %s3 = inlined_call_operand.hbm [shape: f32[2,4,256], index: 3, kind: output, shape index: {}]
  %s4 = sld [smem:[#allocation0]]
  $region53: #{tpu_custom_call.1} parent=0
    _
  %s6 = ssub.s32 1, %s4
  %s7 = scalar_select 0, %s6, %s4
  $region1: #{tpu_custom_call.1} parent=0
    #allocation2 [shape = 'u8[4096]{0}', space=vmem, size = 0x1000, scoped, tag = 'input window, operand 0']
    #allocation3 [shape = 's32[2]{0}', space=sflag, size = 0x8, scoped, tag = 'scoped memory for tpu_custom_call.1']
    #allocation4 [shape = 's32[2]{0}', space=sflag, size = 0x8, scoped, tag = 'scoped memory for tpu_custom_call.1']
    #allocation5 [shape = 'u8[2048]{0}', space=vmem, size = 0x800, scoped, tag = 'input window, operand 1, single buffered']
    #allocation6 [shape = 's32[1]{0}', space=sflag, size = 0x4, scoped, tag = 'scoped memory for tpu_custom_call.1']
    #allocation7 [shape = 'u8[4096]{0}', space=vmem, size = 0x1000, scoped, tag = 'output window, operand 0']
    %8 = vsyncpa [#allocation3], 0
    %s9 = scalar_lea.sflag [#allocation3], 1
    %10 = vsyncpa %s9, 0
    %11 = vsyncpa [#allocation6], 0
    %12 = vsyncpa [#allocation4], 0
    %s13 = scalar_lea.sflag [#allocation4], 1
    %14 = vsyncpa %s13, 0
    loop: start=0, step=1, limit=6
    $region2: #{tpu_custom_call.1} parent=1 // loop_pre_header
      _
    $region3: #{tpu_custom_call.1} parent=1 // loop_header
      %s16 = sphi 0, %s20
      %p17 = scmp.ge.s32.totalorder %s16, 6
      %s23 = sphi 0, %s35
      %s24 = sphi 0, %s31
      %s25 = sphi 0, %s23
      %s26 = sphi 0, %s24
      %s27 = sphi 0, %s25
      %s28 = sphi 0, %s26
      %s40 = sphi 0, %s42
      %s43 = sphi 0, %s40
      %s44 = sphi 0, %s43
      %s60 = sphi 0, %s44
      %s64 = sphi 0, %s64
      %s66 = sphi 0, %s64
      %s67 = sphi 0, %s66
      %s81 = sphi 0, %s67
      %s85 = sphi 0, %s85
      %s87 = sphi 0, %s85
      %s88 = sphi 0, %s87
      %s102 = sphi 0, %s88
      %s110 = sphi 0, %s112
      %s113 = sphi 0, %s110
      %s114 = sphi 0, %s113
      %s130 = sphi 0, %s114
    $region4: #{tpu_custom_call.1} parent=1 // loop_header_branch
      %19 = sbr.rel (%p17) target = $region8
    $region5: #{tpu_custom_call.1} parent=1 // loop_body
      %s21 = ssub.s32 %s16, 1
      %s22 = ssub.s32 %s16, 2
      %s29 = sadd.s32 1, %s24
      %p30 = scmp.ge.s32.totalorder %s29, 2
      %s31 = scalar_select %p30, 0, %s29
      %s32 = sadd.s32 1, %s23
      %s33 = scalar_select %p30, %s32, %s23
      %p34 = scmp.ge.s32.totalorder %s33, 2
      %s35 = scalar_select %p34, 0, %s33
      %s36 = ssub.s32 %s23, %s35
      %s37 = ssub.s32 %s24, %s31
      %s38 = sor.u32 %s36, %s37
      %p39 = scmp.eq.s32.totalorder %s38, 0
      %s41 = sadd.s32 %s40, 1
      %s42 = scalar_select %p39, %s40, %s41
      %p45 = pneg %p39
      %p46 = scmp.eq.s32.totalorder %s16, 3
      %p47 = por %p45, %p46
      %p48 = scmp.ne.s32.totalorder %s40, %s43
      %p49 = scmp.eq.s32.totalorder %s16, 0
      %p50 = por %p48, %p49
      %p51 = scmp.ne.s32.totalorder %s40, %s43
      %p52 = scmp.eq.s32.totalorder %s21, 3
      %p53 = por %p51, %p52
      %p54 = scmp.ne.s32.totalorder %s43, %s44
      %p55 = scmp.eq.s32.totalorder %s21, 0
      %p56 = por %p54, %p55
      %p57 = scmp.ne.s32.totalorder %s43, %s44
      %p58 = scmp.eq.s32.totalorder %s22, 3
      %p59 = por %p57, %p58
      %p61 = scmp.ne.s32.totalorder %s44, %s60
      %p62 = scmp.eq.s32.totalorder %s22, 0
      %p63 = por %p61, %p62
      %s65 = sadd.s32 %s64, 1
      %p68 = scmp.eq.s32.totalorder %s16, 3
      %p69 = scmp.ne.s32.totalorder %s64, %s66
      %p70 = scmp.eq.s32.totalorder %s16, 0
      %p71 = por %p69, %p70
      %p72 = scmp.ne.s32.totalorder %s64, %s66
      %p73 = scmp.eq.s32.totalorder %s21, 3
      %p74 = por %p72, %p73
      %p75 = scmp.ne.s32.totalorder %s66, %s67
      %p76 = scmp.eq.s32.totalorder %s21, 0
      %p77 = por %p75, %p76
      %p78 = scmp.ne.s32.totalorder %s66, %s67
      %p79 = scmp.eq.s32.totalorder %s22, 3
      %p80 = por %p78, %p79
      %p82 = scmp.ne.s32.totalorder %s67, %s81
      %p83 = scmp.eq.s32.totalorder %s22, 0
      %p84 = por %p82, %p83
      %s86 = sadd.s32 %s85, 1
      %p89 = scmp.eq.s32.totalorder %s16, 3
      %p90 = scmp.ne.s32.totalorder %s85, %s87
      %p91 = scmp.eq.s32.totalorder %s16, 0
      %p92 = por %p90, %p91
      %p93 = scmp.ne.s32.totalorder %s85, %s87
      %p94 = scmp.eq.s32.totalorder %s21, 3
      %p95 = por %p93, %p94
      %p96 = scmp.ne.s32.totalorder %s87, %s88
      %p97 = scmp.eq.s32.totalorder %s21, 0
      %p98 = por %p96, %p97
      %p99 = scmp.ne.s32.totalorder %s87, %s88
      %p100 = scmp.eq.s32.totalorder %s22, 3
      %p101 = por %p99, %p100
      %p103 = scmp.ne.s32.totalorder %s88, %s102
      %p104 = scmp.eq.s32.totalorder %s22, 0
      %p105 = por %p103, %p104
      %s106 = ssub.s32 %s23, %s35
      %s107 = ssub.s32 %s24, %s31
      %s108 = sor.u32 %s106, %s107
      %p109 = scmp.eq.s32.totalorder %s108, 0
      %s111 = sadd.s32 %s110, 1
      %s112 = scalar_select %p109, %s110, %s111
      %p115 = pneg %p109
      %p116 = scmp.eq.s32.totalorder %s16, 3
      %p117 = por %p115, %p116
      %p118 = scmp.ne.s32.totalorder %s110, %s113
      %p119 = scmp.eq.s32.totalorder %s16, 0
      %p120 = por %p118, %p119
      %p121 = scmp.ne.s32.totalorder %s110, %s113
      %p122 = scmp.eq.s32.totalorder %s21, 3
      %p123 = por %p121, %p122
      %p124 = scmp.ne.s32.totalorder %s113, %s114
      %p125 = scmp.eq.s32.totalorder %s21, 0
      %p126 = por %p124, %p125
      %p127 = scmp.ne.s32.totalorder %s113, %s114
      %p128 = scmp.eq.s32.totalorder %s22, 3
      %p129 = por %p127, %p128
      %p131 = scmp.ne.s32.totalorder %s114, %s130
      %p132 = scmp.eq.s32.totalorder %s22, 0
      %p133 = por %p131, %p132
      %p134 = scmp.le.s32.totalorder 1, %s16
      %p135 = scmp.lt.s32.totalorder %s16, 5
      %p136 = pnand %p134, %p135
      %p137 = pneg %p136
      // Predicated region
      $region9: #{tpu_custom_call.1} parent=5 // pred_check
        _
      $region10: #{tpu_custom_call.1} parent=5 // pred_check_branch
        %139 = sbr.rel (%p136) target = $region12
      $region11: #{tpu_custom_call.1} parent=5 // pred_region
        %s140 = ssub.s32 %s16, 1
        // Predicated region
        $region13: #{tpu_custom_call.1} parent=11 // pred_check
          %p141 = pneg %p77
        $region14: #{tpu_custom_call.1} parent=11 // pred_check_branch
          %143 = sbr.rel (%p141) target = $region16
        $region15: #{tpu_custom_call.1} parent=11 // pred_region
          %s145 = ssub.s32 64, 64
          %146 = vsyncadd [#allocation6], %s145
          %s148 = sshll.u32 [#allocation5], 4
          %s149 = int_to_ptr.vmem [resolvable:$true] %s148
          %151 = dma.hbm_to_vmem [thread:$0]  %s1, 64, %s149, [#allocation6]
        $region16: #{tpu_custom_call.1} parent=11 // pred_fallthru
          _
        // Predicated region
        $region17: #{tpu_custom_call.1} parent=11 // pred_check
          %p152 = pneg %p98
        $region18: #{tpu_custom_call.1} parent=11 // pred_check_branch
          %154 = sbr.rel (%p152) target = $region20
        $region19: #{tpu_custom_call.1} parent=11 // pred_region
          _
        $region20: #{tpu_custom_call.1} parent=11 // pred_fallthru
          _
      $region12: #{tpu_custom_call.1} parent=5 // pred_fallthru
        _
      %p155 = scmp.lt.s32.totalorder %s16, 4
      // Predicated region
      $region21: #{tpu_custom_call.1} parent=5 // pred_check
        %p156 = pneg %p155
      $region22: #{tpu_custom_call.1} parent=5 // pred_check_branch
        %158 = sbr.rel (%p156) target = $region24
      $region23: #{tpu_custom_call.1} parent=5 // pred_region
        // Predicated region
        $region25: #{tpu_custom_call.1} parent=23 // pred_check
          %p159 = pneg %p50
        $region26: #{tpu_custom_call.1} parent=23 // pred_check_branch
          %161 = sbr.rel (%p159) target = $region28
        $region27: #{tpu_custom_call.1} parent=23 // pred_region
          %s162 = sand.u32 %s40, 1
          %s163 = scalar_lea.sflag [#allocation3], %s162
          %s164 = sand.u32 %s40, 1
          %s165 = smul.addr %s164, 4
          %s166 = scalar_lea.vmem [#allocation2], %s165
          %s168 = ssub.s32 64, 64
          %169 = vsyncadd %s163, %s168
          %s170 = smul.addr %s23, 2
          %s171 = sadd.s32 %s24, %s170
          %s172 = smul.addr %s171, 64
          %s173 = scalar_lea.hbm %s0, %s172
          %s175 = sshll.u32 %s166, 4
          %s176 = int_to_ptr.vmem [resolvable:$true] %s175
          %178 = dma.hbm_to_vmem [thread:$0]  %s173, 64, %s176, %s163
        $region28: #{tpu_custom_call.1} parent=23 // pred_fallthru
          _
      $region24: #{tpu_custom_call.1} parent=5 // pred_fallthru
        _
      %p179 = scmp.le.s32.totalorder 1, %s16
      %p180 = scmp.lt.s32.totalorder %s16, 5
      %p181 = pnand %p179, %p180
      %p182 = pneg %p181
      // Predicated region
      $region29: #{tpu_custom_call.1} parent=5 // pred_check
        _
      $region30: #{tpu_custom_call.1} parent=5 // pred_check_branch
        %184 = sbr.rel (%p181) target = $region32
      $region31: #{tpu_custom_call.1} parent=5 // pred_region
        %s185 = ssub.s32 %s16, 1
        %s186 = sand.u32 %s43, 1
        %s187 = scalar_lea.sflag [#allocation3], %s186
        %s188 = sand.u32 %s43, 1
        %s189 = smul.addr %s188, 4
        %s190 = scalar_lea.vmem [#allocation2], %s189
        // Predicated region
        $region33: #{tpu_custom_call.1} parent=31 // pred_check
          %p191 = pneg %p56
        $region34: #{tpu_custom_call.1} parent=31 // pred_check_branch
          %193 = sbr.rel (%p191) target = $region36
        $region35: #{tpu_custom_call.1} parent=31 // pred_region
          %194 = dma.done %s187, 64
        $region36: #{tpu_custom_call.1} parent=31 // pred_fallthru
          _
        // Predicated region
        $region37: #{tpu_custom_call.1} parent=31 // pred_check
          %p195 = pneg %p77
        $region38: #{tpu_custom_call.1} parent=31 // pred_check_branch
          %197 = sbr.rel (%p195) target = $region40
        $region39: #{tpu_custom_call.1} parent=31 // pred_region
          %198 = dma.done [#allocation6], 64
        $region40: #{tpu_custom_call.1} parent=31 // pred_fallthru
          _
        %s199 = sand.u32 %s43, 1
        %s200 = scalar_lea.sflag [#allocation3], %s199
        %s201 = sand.u32 %s43, 1
        %s202 = smul.addr %s201, 4
        %s203 = scalar_lea.vmem [#allocation2], %s202
        %p204 = pneg %p56
        %p205 = pneg %p53
        %p206 = pneg %p77
        %p207 = pneg %p74
        %p208 = pneg %p98
        %p209 = pneg %p95
        %p210 = pneg %p126
        %p211 = pneg %p123
        %s212 = sand.u32 %s113, 1
        %s213 = scalar_lea.sflag [#allocation4], %s212
        %s214 = sand.u32 %s113, 1
        %s215 = smul.addr %s214, 4
        %s216 = scalar_lea.vmem [#allocation7], %s215
        %v217 = vld [vmem:[%s190] sm:$0xf]
        %v218 = vlaneseq
        %v219 = vshrl.u32 %v218, 7
        %v220 = vsub.s32 0, %v219
        %v221 = vrot.slane %v217, %v220
        %v222 = vsub.f32 %v217, %v221
        %vm223 = vcmask 1043456
        %v224 = vsel %vm223, %v222, 0.0
        %v225 = vrot.slane %v224, 4
        %v226 = vadd.f32 %v224, %v225
        %v227 = vrot.slane %v226, 2
        %v228 = vadd.f32 %v226, %v227
        %v229 = vrot.slane %v228, 1
        %v230 = vadd.f32 %v228, %v229
        %v231 = vmul.f32 %v222, %v222
        %v232 = vsel %vm223, %v231, 0.0
        %v233 = vrot.slane %v232, 4
        %v234 = vadd.f32 %v232, %v233
        %v235 = vrot.slane %v234, 2
        %v236 = vadd.f32 %v234, %v235
        %v237 = vrot.slane %v236, 1
        %v238 = vadd.f32 %v236, %v237
        %v239 = vmul.f32 %v230, 0.25
        %v240 = vadd.f32 %v217, %v239
        %v241 = vmul.f32 %v238, 0.25
        %v242 = vmul.f32 %v239, %v239
        %v243 = vsub.f32 %v241, %v242
        %v244 = vmax.f32 %v243, 0.0
        %v245 = vrsqrt.pop %v244
        %v246 = vmul.f32 %v244, %v245
        %vm247 = vcmp.eq.f32.partialorder %v244, inf
        %v248 = vsel %vm247, %v244, %v246
        %vm249 = vcmp.eq.f32.partialorder %v244, 0.0
        %v250 = vand.u32 %v244, 2147483648
        %v251 = vsel %vm249, %v250, %v248
        %v252 = vadd.f32 %v251, 1e-05
        %v253 = vrcp.pop %v252
        %v254 = vlaneseq
        %v255 = vshrl.u32 %v254, 7
        %v256 = vsub.s32 0, %v255
        %v257 = vrot.slane %v240, %v256
        %v258 = vsub.f32 %v217, %v257
        %v259 = vmul.f32 %v258, %v253
        %v260 = vld [vmem:[#allocation5] sm:$0xf]
        %v261 = vmul.f32 %v259, %v260
        %v262 = vld [vmem:[%s2] sm:$0xf]
        %v263 = vadd.f32 %v261, %v262
        %264 = vst [vmem:[%s216] sm:$0xf] %v263
        %s265 = sand.u32 %s113, 1
        %s266 = scalar_lea.sflag [#allocation4], %s265
        %s267 = sand.u32 %s113, 1
        %s268 = smul.addr %s267, 4
        %s269 = scalar_lea.vmem [#allocation7], %s268
        // Predicated region
        $region41: #{tpu_custom_call.1} parent=31 // pred_check
          %p270 = pneg %p123
        $region42: #{tpu_custom_call.1} parent=31 // pred_check_branch
          %272 = sbr.rel (%p270) target = $region44
        $region43: #{tpu_custom_call.1} parent=31 // pred_region
          %s274 = ssub.s32 64, 64
          %275 = vsyncadd %s266, %s274
          %s276 = smul.addr %s25, 2
          %s277 = sadd.s32 %s26, %s276
          %s278 = smul.addr %s277, 64
          %s279 = scalar_lea.hbm %s3, %s278
          %s281 = sshll.u32 %s269, 4
          %s282 = int_to_ptr.vmem [resolvable:$true] %s281
          %284 = dma.vmem_to_hbm [thread:$0]  %s282, 64, %s279, %s266
        $region44: #{tpu_custom_call.1} parent=31 // pred_fallthru
          _
      $region32: #{tpu_custom_call.1} parent=5 // pred_fallthru
        _
      %p285 = scmp.le.s32.totalorder 2, %s16
      // Predicated region
      $region45: #{tpu_custom_call.1} parent=5 // pred_check
        %p286 = pneg %p285
      $region46: #{tpu_custom_call.1} parent=5 // pred_check_branch
        %288 = sbr.rel (%p286) target = $region48
      $region47: #{tpu_custom_call.1} parent=5 // pred_region
        %s289 = ssub.s32 %s16, 2
        // Predicated region
        $region49: #{tpu_custom_call.1} parent=47 // pred_check
          %p290 = pneg %p129
        $region50: #{tpu_custom_call.1} parent=47 // pred_check_branch
          %292 = sbr.rel (%p290) target = $region52
        $region51: #{tpu_custom_call.1} parent=47 // pred_region
          %s293 = sand.u32 %s114, 1
          %s294 = scalar_lea.sflag [#allocation4], %s293
          %s295 = sand.u32 %s114, 1
          %s296 = smul.addr %s295, 4
          %s297 = scalar_lea.vmem [#allocation7], %s296
          %298 = dma.done %s294, 64
        $region52: #{tpu_custom_call.1} parent=47 // pred_fallthru
          _
      $region48: #{tpu_custom_call.1} parent=5 // pred_fallthru
        _
    $region6: #{tpu_custom_call.1} parent=1 // loop_footer
      %s20 = sadd.s32 1, %s16
    $region7: #{tpu_custom_call.1} parent=1 // loop_footer_branch
      %15 = sbr.rel target = $region3
    $region8: #{tpu_custom_call.1} parent=1 // loop_exit
      _
    %299 = vsyncpa [#allocation3], 1
    %s300 = scalar_lea.sflag [#allocation3], 1
    %301 = vsyncpa %s300, 1
    %302 = vsyncpa [#allocation6], 1
    %303 = vsyncpa [#allocation4], 1
    %s304 = scalar_lea.sflag [#allocation4], 1
    %305 = vsyncpa %s304, 1

</llo_original>
